<compile_context>
chip_gen: v7x
topology: tpu7x:2x2x1
jax: 0.10.0
libtpu: 0.0.40
codegen_flags: <defaults>
</compile_context>

<pallas_src>
import jax
import jax.numpy as jnp
from jax.experimental import pallas as pl
from jax.experimental.pallas import tpu as pltpu


def _round_up(x, m):
    return (x + m - 1) // m * m


# ----------------------------------------------------------------------------
# Fused kernel: embedding bags (mean) -> first Linear (fused) -> MLP -> merged heads
# ----------------------------------------------------------------------------
def _make_dan_fused_kernel(num_bags, num_hidden, seq_lens, embed_dims):
    seq_offsets, emb_offsets = [], []
    so = eo = 0
    for s, e in zip(seq_lens, embed_dims):
        seq_offsets.append(so)
        emb_offsets.append(eo)
        so += s
        eo += e

    def kernel(*refs):
        idx_ref = refs[0]                                  # (Bt, S_pad) int32 (packed)
        table_refs = refs[1:1 + num_bags]                  # each (V_k, E_k)
        p = 1 + num_bags
        w0_ref = refs[p]                                   # (input_size, hidden_pad), mean folded in
        b0_ref = refs[p + 1]                               # (1, hidden_pad) f32
        hidden_refs = refs[p + 2: p + 2 + 2 * (num_hidden - 1)]
        q = p + 2 + 2 * (num_hidden - 1)
        w_head_ref = refs[q]                               # (hidden_pad, head_pad)
        b_head_ref = refs[q + 1]                           # (1, head_pad) f32
        out_ref = refs[q + 2]                              # (Bt, head_pad)

        bt = out_ref.shape[0]
        hidden_pad = w0_ref.shape[1]

        idx_all = idx_ref[...]                             # one dense (Bt, S_pad) load
        w0_all = w0_ref[...]                               # load once; slice the value

        # ---- EmbeddingBag(mean) fused into first Linear:  acc += pooled_k @ W0_k ----
        acc = jnp.zeros((bt, hidden_pad), dtype=jnp.float32)
        for k in range(num_bags):
            s0, slen = seq_offsets[k], seq_lens[k]
            e0, edim = emb_offsets[k], embed_dims[k]
            table = table_refs[k][...]                     # (V_k, E_k) param dtype
            vocab = table.shape[0]

            # counts[b, v] = #occurrences of token v in bag k of row b.
            # f32 partial accumulators break the S-long serial VALU chain.
            iota_v = jax.lax.broadcasted_iota(jnp.int32, (bt, vocab), 1)
            n_parts = max(1, min(4, slen))
            parts = [jnp.zeros((bt, vocab), jnp.float32) for _ in range(n_parts)]
            for s in range(slen):
                col = idx_all[:, s0 + s: s0 + s + 1]       # (Bt, 1) int32
                parts[s % n_parts] = parts[s % n_parts] + (col == iota_v).astype(jnp.float32)
            counts = parts[0]
            for pa in parts[1:]:
                counts = counts + pa

            pooled = jnp.dot(counts.astype(table.dtype), table,
                             preferred_element_type=jnp.float32)     # (Bt, E_k) f32
            w0_k = w0_all[e0:e0 + edim, :]                 # (E_k, hidden_pad), 1/S_k folded
            acc = acc + jnp.dot(pooled.astype(w0_k.dtype), w0_k,
                                preferred_element_type=jnp.float32)

        # ---- first Linear epilogue + remaining [Linear -> ReLU] layers (f32 VPU) ----
        h = jnp.maximum(acc + b0_ref[...].astype(jnp.float32), 0.0)
        for i in range(num_hidden - 1):
            w = hidden_refs[2 * i][...]                    # (hidden_pad, hidden_pad)
            b = hidden_refs[2 * i + 1][...]                # (1, hidden_pad) f32
            h = jnp.dot(h.astype(w.dtype), w,
                        preferred_element_type=jnp.float32) + b.astype(jnp.float32)
            h = jnp.maximum(h, 0.0)

        # ---- merged (classification || consistency) head, lane-dense output store ----
        w_head = w_head_ref[...]
        out = jnp.dot(h.astype(w_head.dtype), w_head,
                      preferred_element_type=jnp.float32) + b_head_ref[...].astype(jnp.float32)
        out_ref[...] = out.astype(out_ref.dtype)

    return kernel


# ----------------------------------------------------------------------------
# Wrapper: packing, padding, head merge, BlockSpecs, pallas_call
# ----------------------------------------------------------------------------
def dan_forward(xs, params, *, batch_tile=256):
    """xs: dict name -> (B, S) int32 token indices. Returns (classification, consistency)."""
    bag_order = params["bag_order"]
    idx_list = [xs[n] for n in bag_order]
    tables = [params["embedding_tables"][n] for n in bag_order]
    hidden_params = params["hidden_params"]                # num_layers-1 (w, b) pairs
    num_hidden = params["num_layers"] - 1
    output_size = params["output_size"]

    batch = idx_list[0].shape[0]
    seq_lens = [a.shape[1] for a in idx_list]
    embed_dims = [t.shape[1] for t in tables]
    input_size = sum(embed_dims)
    hidden_size = hidden_params[0][0].shape[1]
    hidden_pad = _round_up(hidden_size, 128)
    head_width = _round_up(2 * output_size, 128)
    f32 = jnp.float32

    # ---- batch tiling: multiple of 8 sublanes; try >=2 tiles for v7x megacore ----
    b_tile = _round_up(min(batch_tile, _round_up(batch, 8)), 8)
    if batch > 8 and _round_up(batch, b_tile) // b_tile < 2:
        b_tile = max(8, min(b_tile, _round_up((batch + 1) // 2, 8)))
    b_pad = _round_up(batch, b_tile)
    num_tiles = b_pad // b_tile

    # ---- pack all bags' indices into one lane-dense int32 slab ----
    s_total = sum(seq_lens)
    s_pad = _round_up(s_total, 128)
    packed_idx = jnp.concatenate([a.astype(jnp.int32) for a in idx_list], axis=1)
    packed_idx = jnp.pad(packed_idx, ((0, b_pad - batch), (0, s_pad - s_total)))

    # ---- first Linear: fold 1/S_k mean into per-bag row slices; pad N to 128 ----
    w0, b0 = hidden_params[0]
    scale_rows = jnp.concatenate(
        [jnp.full((e,), 1.0 / float(s), dtype=f32) for e, s in zip(embed_dims, seq_lens)])
    w0_scaled = (w0.astype(f32) * scale_rows[:, None]).astype(w0.dtype)
    w0_p = jnp.pad(w0_scaled, ((0, 0), (0, hidden_pad - hidden_size)))
    b0_p = jnp.pad(b0.astype(f32).reshape(1, -1), ((0, 0), (0, hidden_pad - hidden_size)))

    # ---- remaining hidden layers: pad rows/cols to hidden_pad; biases stay f32 ----
    hid_flat = []
    for (w, b) in hidden_params[1:]:
        w_p = jnp.pad(w, ((0, hidden_pad - w.shape[0]), (0, hidden_pad - w.shape[1])))
        b_p = jnp.pad(b.astype(f32).reshape(1, -1), ((0, 0), (0, hidden_pad - b.shape[-1])))
        hid_flat += [w_p, b_p]

    # ---- merged, lane-padded (classification || consistency) head ----
    wc, bc = params["cls_params"]
    wk, bk = params["con_params"]
    w_head = jnp.concatenate([wc, wk], axis=1)
    w_head = jnp.pad(w_head, ((0, hidden_pad - hidden_size),
                              (0, head_width - 2 * output_size)))
    b_head = jnp.concatenate([bc.reshape(1, -1), bk.reshape(1, -1)], axis=1).astype(f32)
    b_head = jnp.pad(b_head, ((0, 0), (0, head_width - 2 * output_size)))

    # ---- BlockSpecs: activations batch-tiled, parameters VMEM-resident ----
    def resident(shape):
        nd = len(shape)
        return pl.BlockSpec(tuple(shape), lambda i, _nd=nd: (0,) * _nd)

    flat_inputs = [packed_idx]
    in_specs = [pl.BlockSpec((b_tile, s_pad), lambda i: (i, 0))]
    for t in tables:
        flat_inputs.append(t)
        in_specs.append(resident(t.shape))
    for x in [w0_p, b0_p] + hid_flat + [w_head, b_head]:
        flat_inputs.append(x)
        in_specs.append(resident(x.shape))

    out_spec = pl.BlockSpec((b_tile, head_width), lambda i: (i, 0))
    out_shape = jax.ShapeDtypeStruct((b_pad, head_width), f32)

    # ---- VMEM budget derived from actual tensor sizes (double-buffered blocks) ----
    def nb(x):
        return int(x.size) * x.dtype.itemsize

    param_bytes = sum(nb(x) for x in flat_inputs[1:])
    idx_tile_bytes = b_tile * s_pad * 4
    out_tile_bytes = b_tile * head_width * 4
    max_vocab_pad = max(_round_up(t.shape[0], 128) for t in tables)
    inter_bytes = b_tile * (6 * max_vocab_pad + 4 * hidden_pad) * 4   # counts parts + acts
    vmem_limit = (2 * param_bytes + 2 * idx_tile_bytes + 2 * out_tile_bytes
                  + inter_bytes + (8 << 20))
    vmem_limit = int(min(max(vmem_limit, 16 << 20), 128 << 20))

    # ---- rough cost estimate so XLA schedules the fused custom call sensibly ----
    flops = 0
    for t, s, e in zip(tables, seq_lens, embed_dims):
        v = t.shape[0]
        flops += 2 * b_pad * v * s               # counts build
        flops += 2 * b_pad * v * e               # counts @ table
        flops += 2 * b_pad * e * hidden_pad      # pooled @ W0_k
    flops += 2 * b_pad * hidden_pad * hidden_pad * max(0, num_hidden - 1)
    flops += 2 * b_pad * hidden_pad * head_width
    bytes_accessed = sum(nb(x) for x in flat_inputs) + b_pad * head_width * 4

    kernel = _make_dan_fused_kernel(
        num_bags=len(bag_order),
        num_hidden=num_hidden,
        seq_lens=seq_lens,
        embed_dims=embed_dims,
    )

    out = pl.pallas_call(
        kernel,
        out_shape=out_shape,
        grid_spec=pltpu.PrefetchScalarGridSpec(
            num_scalar_prefetch=0,
            grid=(num_tiles,),
            in_specs=in_specs,
            out_specs=out_spec,
        ),
        compiler_params=pltpu.CompilerParams(
            dimension_semantics=("parallel",),
            vmem_limit_bytes=vmem_limit,
        ),
        cost_estimate=pl.CostEstimate(
            flops=int(flops), transcendentals=0, bytes_accessed=int(bytes_accessed)),
    )(*flat_inputs)

    out = out[:batch]
    return out[:, :output_size], out[:, output_size:2 * output_size]


# ----------------------------------------------------------------------------
# Parameter construction / dtype casting helpers
# ----------------------------------------------------------------------------
def init_dan_params(key, bag_specs, num_layers, hidden_size, output_size):
    """bag_specs: list of (name, (vocab_size, embedding_dim))."""
    params = {
        "bag_order": [name for name, _ in bag_specs],
        "embedding_tables": {},
        "hidden_params": [],
        "num_layers": num_layers,
        "output_size": output_size,
    }
    input_size = sum(dim for _, (_, dim) in bag_specs)

    for name, (vocab, dim) in bag_specs:
        key, sub = jax.random.split(key)
        params["embedding_tables"][name] = (
            jax.random.normal(sub, (vocab, dim), dtype=jnp.float32) * 0.1)

    in_f = input_size
    for _ in range(num_layers - 1):
        key, kw, kb = jax.random.split(key, 3)
        w = jax.random.normal(kw, (in_f, hidden_size), dtype=jnp.float32) * 0.05
        b = jax.random.normal(kb, (1, hidden_size), dtype=jnp.float32) * 0.01
        params["hidden_params"].append((w, b))
        in_f = hidden_size

    key, kw1, kb1, kw2, kb2 = jax.random.split(key, 5)
    params["cls_params"] = (
        jax.random.normal(kw1, (hidden_size, output_size), dtype=jnp.float32) * 0.05,
        jax.random.normal(kb1, (1, output_size), dtype=jnp.float32) * 0.01)
    params["con_params"] = (
        jax.random.normal(kw2, (hidden_size, output_size), dtype=jnp.float32) * 0.05,
        jax.random.normal(kb2, (1, output_size), dtype=jnp.float32) * 0.01)
    return params, input_size


def cast_params(params, dtype):
    """Cast tables / weights to `dtype` (MXU operands). Biases stay f32."""
    new = dict(params)
    new["embedding_tables"] = {k: v.astype(dtype)
                               for k, v in params["embedding_tables"].items()}
    new["hidden_params"] = [(w.astype(dtype), b) for (w, b) in params["hidden_params"]]
    new["cls_params"] = (params["cls_params"][0].astype(dtype), params["cls_params"][1])
    new["con_params"] = (params["con_params"][0].astype(dtype), params["con_params"][1])
    return new


# ----------------------------------------------------------------------------
# Test
# ----------------------------------------------------------------------------
if __name__ == "__main__":
    key = jax.random.PRNGKey(0)

    batch_size = 4
    seq_len = 8
    num_layers = 3
    hidden_size = 32
    output_size = 8
    bag_specs = [
        ("bag0", (32, 16)),   # (vocab_size, embedding_dim)
        ("bag1", (48, 16)),
    ]

    key, kp = jax.random.split(key)
    params, input_size = init_dan_params(kp, bag_specs, num_layers,
                                         hidden_size, output_size)

    xs = {}
    for name, (vocab, _) in bag_specs:
        key, ki = jax.random.split(key)
        xs[name] = jax.random.randint(ki, (batch_size, seq_len),
                                      minval=0, maxval=vocab, dtype=jnp.int32)

    # f32 run (strict correctness check)
    out_c, out_k = dan_forward(xs, params)
    jax.block_until_ready((out_c, out_k))

    # Plain-JAX reference (EmbeddingBag 'mean' -> concat -> MLP -> two heads).
    pooled_ref = []
    for name, _ in bag_specs:
        tbl = params["embedding_tables"][name]
        pooled_ref.append(jnp.mean(jnp.take(tbl, xs[name], axis=0), axis=1))
    h_ref = jnp.concatenate(pooled_ref, axis=-1)
    for (w, b) in params["hidden_params"]:
        h_ref = jnp.maximum(h_ref @ w + b, 0.0)
    ref_c = h_ref @ params["cls_params"][0] + params["cls_params"][1]
    ref_k = h_ref @ params["con_params"][0] + params["con_params"][1]
    assert jnp.allclose(out_c, ref_c, atol=1e-4, rtol=1e-4)
    assert jnp.allclose(out_k, ref_k, atol=1e-4, rtol=1e-4)

    # bf16 matmul-operand run: bf16 weights/tables, f32 accumulation + f32 biases.
    params_bf16 = cast_params(params, jnp.bfloat16)
    out_c16, out_k16 = dan_forward(xs, params_bf16)
    jax.block_until_ready((out_c16, out_k16))
    assert jnp.allclose(out_c16, ref_c, atol=2e-2, rtol=1e-1)
    assert jnp.allclose(out_k16, ref_k, atol=2e-2, rtol=1e-1)

    print("KERNEL_OK")
</pallas_src>

<mosaic_0001>
module attributes {stable_mosaic.version = 11 : i64} {
  func.func @kernel(%arg0: i32, %arg1: memref<8x128xi32, #tpu.memory_space<vmem>>, %arg2: memref<32x16xf32, #tpu.memory_space<vmem>>, %arg3: memref<48x16xf32, #tpu.memory_space<vmem>>, %arg4: memref<32x128xf32, #tpu.memory_space<vmem>>, %arg5: memref<1x128xf32, #tpu.memory_space<vmem>>, %arg6: memref<128x128xf32, #tpu.memory_space<vmem>>, %arg7: memref<1x128xf32, #tpu.memory_space<vmem>>, %arg8: memref<128x128xf32, #tpu.memory_space<vmem>>, %arg9: memref<1x128xf32, #tpu.memory_space<vmem>>, %arg10: memref<8x128xf32, #tpu.memory_space<vmem>>) attributes {dimension_semantics = [#tpu.dimension_semantics<parallel>], iteration_bounds = array<i64: 1>, scalar_prefetch = 0 : i64, scratch_operands = 0 : i64, tpu.core_type = #tpu.core_type<tc>, window_params = [{transform_indices = @transform_0, window_bounds = array<i64: 8, 128>}, {pipeline_mode = #tpu.pipeline_mode<synchronous>, transform_indices = @transform_1, window_bounds = array<i64: 32, 16>}, {pipeline_mode = #tpu.pipeline_mode<synchronous>, transform_indices = @transform_2, window_bounds = array<i64: 48, 16>}, {pipeline_mode = #tpu.pipeline_mode<synchronous>, transform_indices = @transform_3, window_bounds = array<i64: 32, 128>}, {pipeline_mode = #tpu.pipeline_mode<synchronous>, transform_indices = @transform_4, window_bounds = array<i64: 1, 128>}, {pipeline_mode = #tpu.pipeline_mode<synchronous>, transform_indices = @transform_5, window_bounds = array<i64: 128, 128>}, {pipeline_mode = #tpu.pipeline_mode<synchronous>, transform_indices = @transform_6, window_bounds = array<i64: 1, 128>}, {pipeline_mode = #tpu.pipeline_mode<synchronous>, transform_indices = @transform_7, window_bounds = array<i64: 128, 128>}, {pipeline_mode = #tpu.pipeline_mode<synchronous>, transform_indices = @transform_8, window_bounds = array<i64: 1, 128>}, {transform_indices = @transform_9, window_bounds = array<i64: 8, 128>}]} {
    %c0 = arith.constant 0 : index
    %c0_0 = arith.constant 0 : index
    %0 = vector.load %arg1[%c0, %c0_0] : memref<8x128xi32, #tpu.memory_space<vmem>>, vector<8x128xi32>
    %c0_1 = arith.constant 0 : index
    %c0_2 = arith.constant 0 : index
    %1 = vector.load %arg4[%c0_1, %c0_2] : memref<32x128xf32, #tpu.memory_space<vmem>>, vector<32x128xf32>
    %cst = arith.constant 0.000000e+00 : f32
    %2 = vector.broadcast %cst : f32 to vector<8x128xf32>
    %c0_3 = arith.constant 0 : index
    %c0_4 = arith.constant 0 : index
    %3 = vector.load %arg2[%c0_3, %c0_4] : memref<32x16xf32, #tpu.memory_space<vmem>>, vector<32x16xf32>
    %4 = tpu.iota {dimensions = array<i32: 1>} : vector<8x32xi32>
    %cst_5 = arith.constant 0.000000e+00 : f32
    %5 = vector.broadcast %cst_5 : f32 to vector<8x32xf32>
    %cst_6 = arith.constant 0.000000e+00 : f32
    %6 = vector.broadcast %cst_6 : f32 to vector<8x32xf32>
    %cst_7 = arith.constant 0.000000e+00 : f32
    %7 = vector.broadcast %cst_7 : f32 to vector<8x32xf32>
    %cst_8 = arith.constant 0.000000e+00 : f32
    %8 = vector.broadcast %cst_8 : f32 to vector<8x32xf32>
    %9 = vector.extract_strided_slice %0 {offsets = [0, 0], sizes = [8, 1], strides = [1, 1]} : vector<8x128xi32> to vector<8x1xi32>
    %10 = vector.broadcast %9 : vector<8x1xi32> to vector<8x32xi32>
    %11 = arith.cmpi eq, %10, %4 : vector<8x32xi32>
    %12 = arith.extui %11 : vector<8x32xi1> to vector<8x32xi32>
    %13 = arith.sitofp %12 : vector<8x32xi32> to vector<8x32xf32>
    %14 = arith.addf %5, %13 : vector<8x32xf32>
    %15 = vector.extract_strided_slice %0 {offsets = [0, 1], sizes = [8, 1], strides = [1, 1]} : vector<8x128xi32> to vector<8x1xi32>
    %16 = vector.broadcast %15 : vector<8x1xi32> to vector<8x32xi32>
    %17 = arith.cmpi eq, %16, %4 : vector<8x32xi32>
    %18 = arith.extui %17 : vector<8x32xi1> to vector<8x32xi32>
    %19 = arith.sitofp %18 : vector<8x32xi32> to vector<8x32xf32>
    %20 = arith.addf %6, %19 : vector<8x32xf32>
    %21 = vector.extract_strided_slice %0 {offsets = [0, 2], sizes = [8, 1], strides = [1, 1]} : vector<8x128xi32> to vector<8x1xi32>
    %22 = vector.broadcast %21 : vector<8x1xi32> to vector<8x32xi32>
    %23 = arith.cmpi eq, %22, %4 : vector<8x32xi32>
    %24 = arith.extui %23 : vector<8x32xi1> to vector<8x32xi32>
    %25 = arith.sitofp %24 : vector<8x32xi32> to vector<8x32xf32>
    %26 = arith.addf %7, %25 : vector<8x32xf32>
    %27 = vector.extract_strided_slice %0 {offsets = [0, 3], sizes = [8, 1], strides = [1, 1]} : vector<8x128xi32> to vector<8x1xi32>
    %28 = vector.broadcast %27 : vector<8x1xi32> to vector<8x32xi32>
    %29 = arith.cmpi eq, %28, %4 : vector<8x32xi32>
    %30 = arith.extui %29 : vector<8x32xi1> to vector<8x32xi32>
    %31 = arith.sitofp %30 : vector<8x32xi32> to vector<8x32xf32>
    %32 = arith.addf %8, %31 : vector<8x32xf32>
    %33 = vector.extract_strided_slice %0 {offsets = [0, 4], sizes = [8, 1], strides = [1, 1]} : vector<8x128xi32> to vector<8x1xi32>
    %34 = vector.broadcast %33 : vector<8x1xi32> to vector<8x32xi32>
    %35 = arith.cmpi eq, %34, %4 : vector<8x32xi32>
    %36 = arith.extui %35 : vector<8x32xi1> to vector<8x32xi32>
    %37 = arith.sitofp %36 : vector<8x32xi32> to vector<8x32xf32>
    %38 = arith.addf %14, %37 : vector<8x32xf32>
    %39 = vector.extract_strided_slice %0 {offsets = [0, 5], sizes = [8, 1], strides = [1, 1]} : vector<8x128xi32> to vector<8x1xi32>
    %40 = vector.broadcast %39 : vector<8x1xi32> to vector<8x32xi32>
    %41 = arith.cmpi eq, %40, %4 : vector<8x32xi32>
    %42 = arith.extui %41 : vector<8x32xi1> to vector<8x32xi32>
    %43 = arith.sitofp %42 : vector<8x32xi32> to vector<8x32xf32>
    %44 = arith.addf %20, %43 : vector<8x32xf32>
    %45 = vector.extract_strided_slice %0 {offsets = [0, 6], sizes = [8, 1], strides = [1, 1]} : vector<8x128xi32> to vector<8x1xi32>
    %46 = vector.broadcast %45 : vector<8x1xi32> to vector<8x32xi32>
    %47 = arith.cmpi eq, %46, %4 : vector<8x32xi32>
    %48 = arith.extui %47 : vector<8x32xi1> to vector<8x32xi32>
    %49 = arith.sitofp %48 : vector<8x32xi32> to vector<8x32xf32>
    %50 = arith.addf %26, %49 : vector<8x32xf32>
    %51 = vector.extract_strided_slice %0 {offsets = [0, 7], sizes = [8, 1], strides = [1, 1]} : vector<8x128xi32> to vector<8x1xi32>
    %52 = vector.broadcast %51 : vector<8x1xi32> to vector<8x32xi32>
    %53 = arith.cmpi eq, %52, %4 : vector<8x32xi32>
    %54 = arith.extui %53 : vector<8x32xi1> to vector<8x32xi32>
    %55 = arith.sitofp %54 : vector<8x32xi32> to vector<8x32xf32>
    %56 = arith.addf %32, %55 : vector<8x32xf32>
    %57 = arith.addf %38, %44 : vector<8x32xf32>
    %58 = arith.addf %57, %50 : vector<8x32xf32>
    %59 = arith.addf %58, %56 : vector<8x32xf32>
    %cst_9 = arith.constant dense<0.000000e+00> : vector<8x16xf32>
    %60 = tpu.matmul %59, %3, %cst_9 {dimension_numbers = #tpu.dot_dimension_numbers<[1], [0], [0], [1], [0, 0, 1, 1], [], []>} : vector<8x32xf32>, vector<32x16xf32>, vector<8x16xf32> -> vector<8x16xf32>
    %61 = vector.extract_strided_slice %1 {offsets = [0, 0], sizes = [16, 128], strides = [1, 1]} : vector<32x128xf32> to vector<16x128xf32>
    %cst_10 = arith.constant dense<0.000000e+00> : vector<8x128xf32>
    %62 = tpu.matmul %60, %61, %cst_10 {dimension_numbers = #tpu.dot_dimension_numbers<[1], [0], [0], [1], [0, 0, 1, 1], [], []>} : vector<8x16xf32>, vector<16x128xf32>, vector<8x128xf32> -> vector<8x128xf32>
    %63 = arith.addf %2, %62 : vector<8x128xf32>
    %c0_11 = arith.constant 0 : index
    %c0_12 = arith.constant 0 : index
    %64 = vector.load %arg3[%c0_11, %c0_12] : memref<48x16xf32, #tpu.memory_space<vmem>>, vector<48x16xf32>
    %65 = tpu.iota {dimensions = array<i32: 1>} : vector<8x48xi32>
    %cst_13 = arith.constant 0.000000e+00 : f32
    %66 = vector.broadcast %cst_13 : f32 to vector<8x48xf32>
    %cst_14 = arith.constant 0.000000e+00 : f32
    %67 = vector.broadcast %cst_14 : f32 to vector<8x48xf32>
    %cst_15 = arith.constant 0.000000e+00 : f32
    %68 = vector.broadcast %cst_15 : f32 to vector<8x48xf32>
    %cst_16 = arith.constant 0.000000e+00 : f32
    %69 = vector.broadcast %cst_16 : f32 to vector<8x48xf32>
    %70 = vector.extract_strided_slice %0 {offsets = [0, 8], sizes = [8, 1], strides = [1, 1]} : vector<8x128xi32> to vector<8x1xi32>
    %71 = vector.broadcast %70 : vector<8x1xi32> to vector<8x48xi32>
    %72 = arith.cmpi eq, %71, %65 : vector<8x48xi32>
    %73 = arith.extui %72 : vector<8x48xi1> to vector<8x48xi32>
    %74 = arith.sitofp %73 : vector<8x48xi32> to vector<8x48xf32>
    %75 = arith.addf %66, %74 : vector<8x48xf32>
    %76 = vector.extract_strided_slice %0 {offsets = [0, 9], sizes = [8, 1], strides = [1, 1]} : vector<8x128xi32> to vector<8x1xi32>
    %77 = vector.broadcast %76 : vector<8x1xi32> to vector<8x48xi32>
    %78 = arith.cmpi eq, %77, %65 : vector<8x48xi32>
    %79 = arith.extui %78 : vector<8x48xi1> to vector<8x48xi32>
    %80 = arith.sitofp %79 : vector<8x48xi32> to vector<8x48xf32>
    %81 = arith.addf %67, %80 : vector<8x48xf32>
    %82 = vector.extract_strided_slice %0 {offsets = [0, 10], sizes = [8, 1], strides = [1, 1]} : vector<8x128xi32> to vector<8x1xi32>
    %83 = vector.broadcast %82 : vector<8x1xi32> to vector<8x48xi32>
    %84 = arith.cmpi eq, %83, %65 : vector<8x48xi32>
    %85 = arith.extui %84 : vector<8x48xi1> to vector<8x48xi32>
    %86 = arith.sitofp %85 : vector<8x48xi32> to vector<8x48xf32>
    %87 = arith.addf %68, %86 : vector<8x48xf32>
    %88 = vector.extract_strided_slice %0 {offsets = [0, 11], sizes = [8, 1], strides = [1, 1]} : vector<8x128xi32> to vector<8x1xi32>
    %89 = vector.broadcast %88 : vector<8x1xi32> to vector<8x48xi32>
    %90 = arith.cmpi eq, %89, %65 : vector<8x48xi32>
    %91 = arith.extui %90 : vector<8x48xi1> to vector<8x48xi32>
    %92 = arith.sitofp %91 : vector<8x48xi32> to vector<8x48xf32>
    %93 = arith.addf %69, %92 : vector<8x48xf32>
    %94 = vector.extract_strided_slice %0 {offsets = [0, 12], sizes = [8, 1], strides = [1, 1]} : vector<8x128xi32> to vector<8x1xi32>
    %95 = vector.broadcast %94 : vector<8x1xi32> to vector<8x48xi32>
    %96 = arith.cmpi eq, %95, %65 : vector<8x48xi32>
    %97 = arith.extui %96 : vector<8x48xi1> to vector<8x48xi32>
    %98 = arith.sitofp %97 : vector<8x48xi32> to vector<8x48xf32>
    %99 = arith.addf %75, %98 : vector<8x48xf32>
    %100 = vector.extract_strided_slice %0 {offsets = [0, 13], sizes = [8, 1], strides = [1, 1]} : vector<8x128xi32> to vector<8x1xi32>
    %101 = vector.broadcast %100 : vector<8x1xi32> to vector<8x48xi32>
    %102 = arith.cmpi eq, %101, %65 : vector<8x48xi32>
    %103 = arith.extui %102 : vector<8x48xi1> to vector<8x48xi32>
    %104 = arith.sitofp %103 : vector<8x48xi32> to vector<8x48xf32>
    %105 = arith.addf %81, %104 : vector<8x48xf32>
    %106 = vector.extract_strided_slice %0 {offsets = [0, 14], sizes = [8, 1], strides = [1, 1]} : vector<8x128xi32> to vector<8x1xi32>
    %107 = vector.broadcast %106 : vector<8x1xi32> to vector<8x48xi32>
    %108 = arith.cmpi eq, %107, %65 : vector<8x48xi32>
    %109 = arith.extui %108 : vector<8x48xi1> to vector<8x48xi32>
    %110 = arith.sitofp %109 : vector<8x48xi32> to vector<8x48xf32>
    %111 = arith.addf %87, %110 : vector<8x48xf32>
    %112 = vector.extract_strided_slice %0 {offsets = [0, 15], sizes = [8, 1], strides = [1, 1]} : vector<8x128xi32> to vector<8x1xi32>
    %113 = vector.broadcast %112 : vector<8x1xi32> to vector<8x48xi32>
    %114 = arith.cmpi eq, %113, %65 : vector<8x48xi32>
    %115 = arith.extui %114 : vector<8x48xi1> to vector<8x48xi32>
    %116 = arith.sitofp %115 : vector<8x48xi32> to vector<8x48xf32>
    %117 = arith.addf %93, %116 : vector<8x48xf32>
    %118 = arith.addf %99, %105 : vector<8x48xf32>
    %119 = arith.addf %118, %111 : vector<8x48xf32>
    %120 = arith.addf %119, %117 : vector<8x48xf32>
    %cst_17 = arith.constant dense<0.000000e+00> : vector<8x16xf32>
    %121 = tpu.matmul %120, %64, %cst_17 {dimension_numbers = #tpu.dot_dimension_numbers<[1], [0], [0], [1], [0, 0, 1, 1], [], []>} : vector<8x48xf32>, vector<48x16xf32>, vector<8x16xf32> -> vector<8x16xf32>
    %122 = vector.extract_strided_slice %1 {offsets = [16, 0], sizes = [16, 128], strides = [1, 1]} : vector<32x128xf32> to vector<16x128xf32>
    %cst_18 = arith.constant dense<0.000000e+00> : vector<8x128xf32>
    %123 = tpu.matmul %121, %122, %cst_18 {dimension_numbers = #tpu.dot_dimension_numbers<[1], [0], [0], [1], [0, 0, 1, 1], [], []>} : vector<8x16xf32>, vector<16x128xf32>, vector<8x128xf32> -> vector<8x128xf32>
    %124 = arith.addf %63, %123 : vector<8x128xf32>
    %c0_19 = arith.constant 0 : index
    %c0_20 = arith.constant 0 : index
    %125 = vector.load %arg5[%c0_19, %c0_20] : memref<1x128xf32, #tpu.memory_space<vmem>>, vector<1x128xf32>
    %126 = vector.broadcast %125 : vector<1x128xf32> to vector<8x128xf32>
    %127 = arith.addf %124, %126 : vector<8x128xf32>
    %cst_21 = arith.constant 0.000000e+00 : f32
    %128 = vector.broadcast %cst_21 : f32 to vector<8x128xf32>
    %129 = arith.maximumf %127, %128 : vector<8x128xf32>
    %c0_22 = arith.constant 0 : index
    %c0_23 = arith.constant 0 : index
    %130 = vector.load %arg6[%c0_22, %c0_23] : memref<128x128xf32, #tpu.memory_space<vmem>>, vector<128x128xf32>
    %c0_24 = arith.constant 0 : index
    %c0_25 = arith.constant 0 : index
    %131 = vector.load %arg7[%c0_24, %c0_25] : memref<1x128xf32, #tpu.memory_space<vmem>>, vector<1x128xf32>
    %cst_26 = arith.constant dense<0.000000e+00> : vector<8x128xf32>
    %132 = tpu.matmul %129, %130, %cst_26 {dimension_numbers = #tpu.dot_dimension_numbers<[1], [0], [0], [1], [0, 0, 1, 1], [], []>} : vector<8x128xf32>, vector<128x128xf32>, vector<8x128xf32> -> vector<8x128xf32>
    %133 = vector.broadcast %131 : vector<1x128xf32> to vector<8x128xf32>
    %134 = arith.addf %132, %133 : vector<8x128xf32>
    %cst_27 = arith.constant 0.000000e+00 : f32
    %135 = vector.broadcast %cst_27 : f32 to vector<8x128xf32>
    %136 = arith.maximumf %134, %135 : vector<8x128xf32>
    %c0_28 = arith.constant 0 : index
    %c0_29 = arith.constant 0 : index
    %137 = vector.load %arg8[%c0_28, %c0_29] : memref<128x128xf32, #tpu.memory_space<vmem>>, vector<128x128xf32>
    %cst_30 = arith.constant dense<0.000000e+00> : vector<8x128xf32>
    %138 = tpu.matmul %136, %137, %cst_30 {dimension_numbers = #tpu.dot_dimension_numbers<[1], [0], [0], [1], [0, 0, 1, 1], [], []>} : vector<8x128xf32>, vector<128x128xf32>, vector<8x128xf32> -> vector<8x128xf32>
    %c0_31 = arith.constant 0 : index
    %c0_32 = arith.constant 0 : index
    %139 = vector.load %arg9[%c0_31, %c0_32] : memref<1x128xf32, #tpu.memory_space<vmem>>, vector<1x128xf32>
    %140 = vector.broadcast %139 : vector<1x128xf32> to vector<8x128xf32>
    %141 = arith.addf %138, %140 : vector<8x128xf32>
    %c0_33 = arith.constant 0 : index
    %c0_34 = arith.constant 0 : index
    %142 = vector.load %arg10[%c0_33, %c0_34] : memref<8x128xf32, #tpu.memory_space<vmem>>, vector<8x128xf32>
    tpu.vector_store %arg10[%c0_33, %c0_34], %141 {strides = array<i32>} : memref<8x128xf32, #tpu.memory_space<vmem>>, vector<8x128xf32>,
    return
  }
  func.func @transform_0(%arg0: i32) -> (i32, i32) {
    %c0_i32 = arith.constant 0 : i32
    %c0_i32_0 = arith.constant 0 : i32
    return %arg0, %c0_i32 : i32, i32
  }
  func.func @transform_1(%arg0: i32) -> (i32, i32) {
    %c0_i32 = arith.constant 0 : i32
    %c0_i32_0 = arith.constant 0 : i32
    %c0_i32_1 = arith.constant 0 : i32
    return %c0_i32, %c0_i32_0 : i32, i32
  }
  func.func @transform_2(%arg0: i32) -> (i32, i32) {
    %c0_i32 = arith.constant 0 : i32
    %c0_i32_0 = arith.constant 0 : i32
    %c0_i32_1 = arith.constant 0 : i32
    return %c0_i32, %c0_i32_0 : i32, i32
  }
  func.func @transform_3(%arg0: i32) -> (i32, i32) {
    %c0_i32 = arith.constant 0 : i32
    %c0_i32_0 = arith.constant 0 : i32
    %c0_i32_1 = arith.constant 0 : i32
    return %c0_i32, %c0_i32_0 : i32, i32
  }
  func.func @transform_4(%arg0: i32) -> (i32, i32) {
    %c0_i32 = arith.constant 0 : i32
    %c0_i32_0 = arith.constant 0 : i32
    %c0_i32_1 = arith.constant 0 : i32
    return %c0_i32, %c0_i32_0 : i32, i32
  }
  func.func @transform_5(%arg0: i32) -> (i32, i32) {
    %c0_i32 = arith.constant 0 : i32
    %c0_i32_0 = arith.constant 0 : i32
    %c0_i32_1 = arith.constant 0 : i32
    return %c0_i32, %c0_i32_0 : i32, i32
  }
  func.func @transform_6(%arg0: i32) -> (i32, i32) {
    %c0_i32 = arith.constant 0 : i32
    %c0_i32_0 = arith.constant 0 : i32
    %c0_i32_1 = arith.constant 0 : i32
    return %c0_i32, %c0_i32_0 : i32, i32
  }
  func.func @transform_7(%arg0: i32) -> (i32, i32) {
    %c0_i32 = arith.constant 0 : i32
    %c0_i32_0 = arith.constant 0 : i32
    %c0_i32_1 = arith.constant 0 : i32
    return %c0_i32, %c0_i32_0 : i32, i32
  }
  func.func @transform_8(%arg0: i32) -> (i32, i32) {
    %c0_i32 = arith.constant 0 : i32
    %c0_i32_0 = arith.constant 0 : i32
    %c0_i32_1 = arith.constant 0 : i32
    return %c0_i32, %c0_i32_0 : i32, i32
  }
  func.func @transform_9(%arg0: i32) -> (i32, i32) {
    %c0_i32 = arith.constant 0 : i32
    %c0_i32_0 = arith.constant 0 : i32
    return %arg0, %c0_i32 : i32, i32
  }
}

</mosaic_0001>

<llo_original>
// kernel: tpu_custom_call.1
$region0: #{tpu_custom_call.1}
  #allocation0 [shape = 'u32[]', space=smem, size = 0x4, offset = 0x4, fixed_abs, tag = 'smem constant byte address 0x4 - core index']
  #allocation1 [shape = 'u32[144,128]{1,0:T(1,128)}', space=vmem, size = 0x12000, scoped, tag = 'internal scratch']
  %s0 = inlined_call_operand.hbm [shape: s32[8,128], index: 0, kind: input, shape index: {}]
  %s1 = inlined_call_operand.vmem [shape: f32[32,16], index: 1, kind: input, shape index: {}]
  %s2 = inlined_call_operand.vmem [shape: f32[48,16], index: 2, kind: input, shape index: {}]
  %s3 = inlined_call_operand.hbm [shape: f32[32,128], index: 3, kind: input, shape index: {}]
  %s4 = inlined_call_operand.vmem [shape: f32[1,128], index: 4, kind: input, shape index: {}]
  %s5 = inlined_call_operand.vmem [shape: f32[128,128], index: 5, kind: input, shape index: {}]
  %s6 = inlined_call_operand.vmem [shape: f32[1,128], index: 6, kind: input, shape index: {}]
  %s7 = inlined_call_operand.hbm [shape: f32[128,128], index: 7, kind: input, shape index: {}]
  %s8 = inlined_call_operand.vmem [shape: f32[1,128], index: 8, kind: input, shape index: {}]
  %s9 = inlined_call_operand.hbm [shape: f32[8,128], index: 9, kind: output, shape index: {}]
  %s10 = sld [smem:[#allocation0]]
  $region58: #{tpu_custom_call.1} parent=0
    _
  %s12 = ssub.s32 1, %s10
  %s13 = scalar_select 0, %s12, %s10
  $region1: #{tpu_custom_call.1} parent=0
    #allocation2 [shape = 'u8[4096]{0}', space=vmem, size = 0x1000, scoped, tag = 'input window, operand 0, single buffered']
    #allocation3 [shape = 's32[1]{0}', space=sflag, size = 0x4, scoped, tag = 'scoped memory for tpu_custom_call.1']
    #allocation4 [shape = 's32[1]{0}', space=sflag, size = 0x4, scoped, tag = 'scoped memory for tpu_custom_call.1']
    #allocation5 [shape = 'u8[16384]{0}', space=vmem, size = 0x4000, scoped, tag = 'input window, operand 3, single buffered']
    #allocation6 [shape = 's32[1]{0}', space=sflag, size = 0x4, scoped, tag = 'scoped memory for tpu_custom_call.1']
    #allocation7 [shape = 'u8[65536]{0}', space=vmem, size = 0x10000, scoped, tag = 'input window, operand 7, single buffered']
    #allocation8 [shape = 'u8[4096]{0}', space=vmem, size = 0x1000, scoped, tag = 'output window, operand 0, single buffered']
    %14 = vsyncpa [#allocation3], 0
    %15 = vsyncpa [#allocation6], 0
    %16 = vsyncpa [#allocation4], 0
    // Predicated region
    $region2: #{tpu_custom_call.1} parent=1 // pred_check
      _
    $region3: #{tpu_custom_call.1} parent=1 // pred_check_branch
      %18 = sbr.rel (0) target = $region5
    $region4: #{tpu_custom_call.1} parent=1 // pred_region
      %s20 = ssub.s32 128, 128
      %21 = vsyncadd [#allocation3], %s20
      %s23 = sshll.u32 [#allocation2], 4
      %s24 = int_to_ptr.vmem [resolvable:$true] %s23
      %26 = dma.hbm_to_vmem [thread:$0]  %s0, 128, %s24, [#allocation3]
    $region5: #{tpu_custom_call.1} parent=1 // pred_fallthru
      _
    // Predicated region
    $region6: #{tpu_custom_call.1} parent=1 // pred_check
      _
    $region7: #{tpu_custom_call.1} parent=1 // pred_check_branch
      %28 = sbr.rel (0) target = $region9
    $region8: #{tpu_custom_call.1} parent=1 // pred_region
      _
    $region9: #{tpu_custom_call.1} parent=1 // pred_fallthru
      _
    // Predicated region
    $region10: #{tpu_custom_call.1} parent=1 // pred_check
      _
    $region11: #{tpu_custom_call.1} parent=1 // pred_check_branch
      %30 = sbr.rel (0) target = $region13
    $region12: #{tpu_custom_call.1} parent=1 // pred_region
      _
    $region13: #{tpu_custom_call.1} parent=1 // pred_fallthru
      _
    // Predicated region
    $region14: #{tpu_custom_call.1} parent=1 // pred_check
      _
    $region15: #{tpu_custom_call.1} parent=1 // pred_check_branch
      %32 = sbr.rel (0) target = $region17
    $region16: #{tpu_custom_call.1} parent=1 // pred_region
      %s34 = ssub.s32 512, 512
      %35 = vsyncadd [#allocation6], %s34
      %s36 = sshll.u32 [#allocation5], 4
      %s37 = int_to_ptr.vmem [resolvable:$true] %s36
      %42 = dma.hbm_to_vmem [thread:$0]  %s3, 512, %s37, [#allocation6], 128, 128, 8
    $region17: #{tpu_custom_call.1} parent=1 // pred_fallthru
      _
    // Predicated region
    $region18: #{tpu_custom_call.1} parent=1 // pred_check
      _
    $region19: #{tpu_custom_call.1} parent=1 // pred_check_branch
      %44 = sbr.rel (0) target = $region21
    $region20: #{tpu_custom_call.1} parent=1 // pred_region
      _
    $region21: #{tpu_custom_call.1} parent=1 // pred_fallthru
      _
    // Predicated region
    $region22: #{tpu_custom_call.1} parent=1 // pred_check
      _
    $region23: #{tpu_custom_call.1} parent=1 // pred_check_branch
      %46 = sbr.rel (0) target = $region25
    $region24: #{tpu_custom_call.1} parent=1 // pred_region
      _
    $region25: #{tpu_custom_call.1} parent=1 // pred_fallthru
      _
    // Predicated region
    $region26: #{tpu_custom_call.1} parent=1 // pred_check
      _
    $region27: #{tpu_custom_call.1} parent=1 // pred_check_branch
      %48 = sbr.rel (0) target = $region29
    $region28: #{tpu_custom_call.1} parent=1 // pred_region
      _
    $region29: #{tpu_custom_call.1} parent=1 // pred_fallthru
      _
    // Predicated region
    $region30: #{tpu_custom_call.1} parent=1 // pred_check
      _
    $region31: #{tpu_custom_call.1} parent=1 // pred_check_branch
      %50 = sbr.rel (0) target = $region33
    $region32: #{tpu_custom_call.1} parent=1 // pred_region
      %s52 = ssub.s32 2048, 2048
      %53 = vsyncadd [#allocation6], %s52
      %s54 = sshll.u32 [#allocation7], 4
      %s55 = int_to_ptr.vmem [resolvable:$true] %s54
      %60 = dma.hbm_to_vmem [thread:$0]  %s7, 2048, %s55, [#allocation6], 128, 128, 8
    $region33: #{tpu_custom_call.1} parent=1 // pred_fallthru
      _
    // Predicated region
    $region34: #{tpu_custom_call.1} parent=1 // pred_check
      _
    $region35: #{tpu_custom_call.1} parent=1 // pred_check_branch
      %62 = sbr.rel (0) target = $region37
    $region36: #{tpu_custom_call.1} parent=1 // pred_region
      _
    $region37: #{tpu_custom_call.1} parent=1 // pred_fallthru
      _
    // Predicated region
    $region38: #{tpu_custom_call.1} parent=1 // pred_check
      _
    $region39: #{tpu_custom_call.1} parent=1 // pred_check_branch
      %64 = sbr.rel (0) target = $region41
    $region40: #{tpu_custom_call.1} parent=1 // pred_region
      %65 = dma.done [#allocation3], 128
    $region41: #{tpu_custom_call.1} parent=1 // pred_fallthru
      _
    // Predicated region
    $region42: #{tpu_custom_call.1} parent=1 // pred_check
      _
    $region43: #{tpu_custom_call.1} parent=1 // pred_check_branch
      %67 = sbr.rel (0) target = $region45
    $region44: #{tpu_custom_call.1} parent=1 // pred_region
      %68 = dma.done [#allocation6], 512
    $region45: #{tpu_custom_call.1} parent=1 // pred_fallthru
      _
    // Predicated region
    $region46: #{tpu_custom_call.1} parent=1 // pred_check
      _
    $region47: #{tpu_custom_call.1} parent=1 // pred_check_branch
      %70 = sbr.rel (0) target = $region49
    $region48: #{tpu_custom_call.1} parent=1 // pred_region
      %71 = dma.done [#allocation6], 2048
    $region49: #{tpu_custom_call.1} parent=1 // pred_fallthru
      _
    %v72 = vld [vmem:[#allocation2] sm:$0xff]
    %v73 = vld [vmem:[#allocation5] sm:$0xff]
    %v74 = vld [vmem:[#allocation5 + $0x8] sm:$0xff]
    %v75 = vld [vmem:[#allocation5 + $0x10] sm:$0xff]
    %v76 = vld [vmem:[#allocation5 + $0x18] sm:$0xff]
    %v77 = vld [vmem:[%s1] sm:$0xff]
    %v78 = vld [vmem:[%s1 + $0x8] sm:$0xff]
    %v79 = vld [vmem:[%s1 + $0x10] sm:$0xff]
    %v80 = vld [vmem:[%s1 + $0x18] sm:$0xff]
    %v81 = vlaneseq
    %v82 = vand.u32 %v81, 127
    %83 = vset.pattern.permute.xlu0 0
    %84 = vperm.xlu0 %83, %v72
    %v85 = vpop.permute.xlu0 %84
    %vm86 = vcmp.eq.s32.totalorder %v85, %v82
    %v87 = vsel %vm86, 1, 0
    %v88 = vcvt.s32.f32 %v87
    %v89 = vadd.f32 %v88, 0.0
    %90 = vset.pattern.permute.xlu0 1
    %91 = vperm.xlu0 %90, %v72
    %v92 = vpop.permute.xlu0 %91
    %vm93 = vcmp.eq.s32.totalorder %v92, %v82
    %v94 = vsel %vm93, 1, 0
    %v95 = vcvt.s32.f32 %v94
    %v96 = vadd.f32 %v95, 0.0
    %97 = vset.pattern.permute.xlu0 2
    %98 = vperm.xlu0 %97, %v72
    %v99 = vpop.permute.xlu0 %98
    %vm100 = vcmp.eq.s32.totalorder %v99, %v82
    %v101 = vsel %vm100, 1, 0
    %v102 = vcvt.s32.f32 %v101
    %v103 = vadd.f32 %v102, 0.0
    %104 = vset.pattern.permute.xlu0 3
    %105 = vperm.xlu0 %104, %v72
    %v106 = vpop.permute.xlu0 %105
    %vm107 = vcmp.eq.s32.totalorder %v106, %v82
    %v108 = vsel %vm107, 1, 0
    %v109 = vcvt.s32.f32 %v108
    %v110 = vadd.f32 %v109, 0.0
    %111 = vset.pattern.permute.xlu0 4
    %112 = vperm.xlu0 %111, %v72
    %v113 = vpop.permute.xlu0 %112
    %vm114 = vcmp.eq.s32.totalorder %v113, %v82
    %v115 = vsel %vm114, 1, 0
    %v116 = vcvt.s32.f32 %v115
    %v117 = vadd.f32 %v89, %v116
    %118 = vset.pattern.permute.xlu0 5
    %119 = vperm.xlu0 %118, %v72
    %v120 = vpop.permute.xlu0 %119
    %vm121 = vcmp.eq.s32.totalorder %v120, %v82
    %v122 = vsel %vm121, 1, 0
    %v123 = vcvt.s32.f32 %v122
    %v124 = vadd.f32 %v96, %v123
    %125 = vset.pattern.permute.xlu0 6
    %126 = vperm.xlu0 %125, %v72
    %v127 = vpop.permute.xlu0 %126
    %vm128 = vcmp.eq.s32.totalorder %v127, %v82
    %v129 = vsel %vm128, 1, 0
    %v130 = vcvt.s32.f32 %v129
    %v131 = vadd.f32 %v103, %v130
    %132 = vset.pattern.permute.xlu0 7
    %133 = vperm.xlu0 %132, %v72
    %v134 = vpop.permute.xlu0 %133
    %vm135 = vcmp.eq.s32.totalorder %v134, %v82
    %v136 = vsel %vm135, 1, 0
    %v137 = vcvt.s32.f32 %v136
    %v138 = vadd.f32 %v110, %v137
    %v139 = vadd.f32 %v117, %v124
    %v140 = vadd.f32 %v139, %v131
    %v141 = vadd.f32 %v140, %v138
    %vm142 = vcmask 261120
    %v144 = vsel %vm142, %v141, 0
    %146 = vmatprep.subr.mxu0 0.0
    %147 = vmatpush1.msra.mxu0 %v77
    %148 = vmatprep.subr.mxu0 0.0
    %149 = vmatpush1.msra.mxu0 %v78
    %150 = vmatprep.subr.mxu0 0.0
    %151 = vmatpush1.msra.mxu0 %v79
    %152 = vmatprep.subr.mxu0 0.0
    %153 = vmatpush1.msra.mxu0 %v80
    %154 = vmatprep.subr.mxu0 0.0
    %155 = vmatpush1.msra.mxu0 0.0
    %156 = vmatprep.subr.mxu0 0.0
    %157 = vmatpush1.msra.mxu0 0.0
    %158 = vmatprep.subr.mxu0 0.0
    %159 = vmatpush1.msra.mxu0 0.0
    %160 = vmatprep.subr.mxu0 0.0
    %161 = vmatpush1.msra.mxu0 0.0
    %162 = vmatprep.subr.mxu0 0.0
    %163 = vmatpush1.msra.mxu0 0.0
    %164 = vmatprep.subr.mxu0 0.0
    %165 = vmatpush1.msra.mxu0 0.0
    %166 = vmatprep.subr.mxu0 0.0
    %167 = vmatpush1.msra.mxu0 0.0
    %168 = vmatprep.subr.mxu0 0.0
    %169 = vmatpush1.msra.mxu0 0.0
    %170 = vmatprep.subr.mxu0 0.0
    %171 = vmatpush1.msra.mxu0 0.0
    %172 = vmatprep.subr.mxu0 0.0
    %173 = vmatpush1.msra.mxu0 0.0
    %174 = vmatprep.subr.mxu0 0.0
    %175 = vmatpush1.msra.mxu0 0.0
    %176 = vmatprep.subr.mxu0 0.0
    %177 = vmatpush1.msra.mxu0 0.0
    %178 = vmatprep.subr.mxu0 0.0
    %179 = vmatpush1.msra.mxu0 0.0
    %180 = vmatprep.subr.mxu0 0.0
    %181 = vmatpush1.msra.mxu0 0.0
    %182 = vmatprep.subr.mxu0 0.0
    %183 = vmatpush1.msra.mxu0 0.0
    %184 = vmatprep.subr.mxu0 0.0
    %185 = vmatpush1.msra.mxu0 0.0
    %186 = vmatprep.subr.mxu0 0.0
    %187 = vmatpush1.msra.mxu0 0.0
    %188 = vmatprep.subr.mxu0 0.0
    %189 = vmatpush1.msra.mxu0 0.0
    %190 = vmatprep.subr.mxu0 0.0
    %191 = vmatpush1.msra.mxu0 0.0
    %192 = vmatprep.subr.mxu0 0.0
    %193 = vmatpush1.msra.mxu0 0.0
    %194 = vmatprep.subr.mxu0 0.0
    %195 = vmatpush1.msra.mxu0 0.0
    %196 = vmatprep.subr.mxu0 0.0
    %197 = vmatpush1.msra.mxu0 0.0
    %198 = vmatprep.subr.mxu0 0.0
    %199 = vmatpush1.msra.mxu0 0.0
    %200 = vmatprep.subr.mxu0 0.0
    %201 = vmatpush1.msra.mxu0 0.0
    %202 = vmatprep.subr.mxu0 0.0
    %203 = vmatpush1.msra.mxu0 0.0
    %204 = vmatprep.subr.mxu0 0.0
    %205 = vmatpush1.msra.mxu0 0.0
    %206 = vmatprep.subr.mxu0 0.0
    %207 = vmatpush1.msra.mxu0 0.0
    %208 = vmatprep.subr.mxu0 0.0
    %209 = vmatpush1.msra.mxu0 0.0
    %210 = vmatprep.mubr.f32.mxu0 0.0
    %211 = vmatmul.mubr.f32.gmra.mrb[0].mxu0 %v144
    %v212 = vpop.f32.mrb[0].mxu0
    %v213 = vadd.f32 0.0, %v212
    %v214 = vpop.f32.mrb[0].mxu0
    %215 = vdwg.mxu0
    %v216 = vld [vmem:[%s2] sm:$0xff]
    %v217 = vld [vmem:[%s2 + $0x8] sm:$0xff]
    %v218 = vld [vmem:[%s2 + $0x10] sm:$0xff]
    %v219 = vld [vmem:[%s2 + $0x18] sm:$0xff]
    %v220 = vld [vmem:[%s2 + $0x20] sm:$0xff]
    %v221 = vld [vmem:[%s2 + $0x28] sm:$0xff]
    %222 = vset.pattern.permute.xlu0 8
    %223 = vperm.xlu0 %222, %v72
    %v224 = vpop.permute.xlu0 %223
    %vm225 = vcmp.eq.s32.totalorder %v224, %v82
    %v226 = vsel %vm225, 1, 0
    %v227 = vcvt.s32.f32 %v226
    %v228 = vadd.f32 %v227, 0.0
    %229 = vset.pattern.permute.xlu0 9
    %230 = vperm.xlu0 %229, %v72
    %v231 = vpop.permute.xlu0 %230
    %vm232 = vcmp.eq.s32.totalorder %v231, %v82
    %v233 = vsel %vm232, 1, 0
    %v234 = vcvt.s32.f32 %v233
    %v235 = vadd.f32 %v234, 0.0
    %236 = vset.pattern.permute.xlu0 10
    %237 = vperm.xlu0 %236, %v72
    %v238 = vpop.permute.xlu0 %237
    %vm239 = vcmp.eq.s32.totalorder %v238, %v82
    %v240 = vsel %vm239, 1, 0
    %v241 = vcvt.s32.f32 %v240
    %v242 = vadd.f32 %v241, 0.0
    %243 = vset.pattern.permute.xlu0 11
    %244 = vperm.xlu0 %243, %v72
    %v245 = vpop.permute.xlu0 %244
    %vm246 = vcmp.eq.s32.totalorder %v245, %v82
    %v247 = vsel %vm246, 1, 0
    %v248 = vcvt.s32.f32 %v247
    %v249 = vadd.f32 %v248, 0.0
    %250 = vset.pattern.permute.xlu0 12
    %251 = vperm.xlu0 %250, %v72
    %v252 = vpop.permute.xlu0 %251
    %vm253 = vcmp.eq.s32.totalorder %v252, %v82
    %v254 = vsel %vm253, 1, 0
    %v255 = vcvt.s32.f32 %v254
    %v256 = vadd.f32 %v228, %v255
    %257 = vset.pattern.permute.xlu0 13
    %258 = vperm.xlu0 %257, %v72
    %v259 = vpop.permute.xlu0 %258
    %vm260 = vcmp.eq.s32.totalorder %v259, %v82
    %v261 = vsel %vm260, 1, 0
    %v262 = vcvt.s32.f32 %v261
    %v263 = vadd.f32 %v235, %v262
    %264 = vset.pattern.permute.xlu0 14
    %265 = vperm.xlu0 %264, %v72
    %v266 = vpop.permute.xlu0 %265
    %vm267 = vcmp.eq.s32.totalorder %v266, %v82
    %v268 = vsel %vm267, 1, 0
    %v269 = vcvt.s32.f32 %v268
    %v270 = vadd.f32 %v242, %v269
    %271 = vset.pattern.permute.xlu0 15
    %272 = vperm.xlu0 %271, %v72
    %v273 = vpop.permute.xlu0 %272
    %vm274 = vcmp.eq.s32.totalorder %v273, %v82
    %v275 = vsel %vm274, 1, 0
    %v276 = vcvt.s32.f32 %v275
    %v277 = vadd.f32 %v249, %v276
    %v278 = vadd.f32 %v256, %v263
    %v279 = vadd.f32 %v278, %v270
    %v280 = vadd.f32 %v279, %v277
    %vm281 = vcmask 392192
    %v283 = vsel %vm281, %v280, 0
    %285 = vmatprep.subr.mxu0 0.0
    %286 = vmatpush1.msra.mxu0 %v216
    %287 = vmatprep.subr.mxu0 0.0
    %288 = vmatpush1.msra.mxu0 %v217
    %289 = vmatprep.subr.mxu0 0.0
    %290 = vmatpush1.msra.mxu0 %v218
    %291 = vmatprep.subr.mxu0 0.0
    %292 = vmatpush1.msra.mxu0 %v219
    %293 = vmatprep.subr.mxu0 0.0
    %294 = vmatpush1.msra.mxu0 %v220
    %295 = vmatprep.subr.mxu0 0.0
    %296 = vmatpush1.msra.mxu0 %v221
    %297 = vmatprep.subr.mxu0 0.0
    %298 = vmatpush1.msra.mxu0 0.0
    %299 = vmatprep.subr.mxu0 0.0
    %300 = vmatpush1.msra.mxu0 0.0
    %301 = vmatprep.subr.mxu0 0.0
    %302 = vmatpush1.msra.mxu0 0.0
    %303 = vmatprep.subr.mxu0 0.0
    %304 = vmatpush1.msra.mxu0 0.0
    %305 = vmatprep.subr.mxu0 0.0
    %306 = vmatpush1.msra.mxu0 0.0
    %307 = vmatprep.subr.mxu0 0.0
    %308 = vmatpush1.msra.mxu0 0.0
    %309 = vmatprep.subr.mxu0 0.0
    %310 = vmatpush1.msra.mxu0 0.0
    %311 = vmatprep.subr.mxu0 0.0
    %312 = vmatpush1.msra.mxu0 0.0
    %313 = vmatprep.subr.mxu0 0.0
    %314 = vmatpush1.msra.mxu0 0.0
    %315 = vmatprep.subr.mxu0 0.0
    %316 = vmatpush1.msra.mxu0 0.0
    %317 = vmatprep.subr.mxu0 0.0
    %318 = vmatpush1.msra.mxu0 0.0
    %319 = vmatprep.subr.mxu0 0.0
    %320 = vmatpush1.msra.mxu0 0.0
    %321 = vmatprep.subr.mxu0 0.0
    %322 = vmatpush1.msra.mxu0 0.0
    %323 = vmatprep.subr.mxu0 0.0
    %324 = vmatpush1.msra.mxu0 0.0
    %325 = vmatprep.subr.mxu0 0.0
    %326 = vmatpush1.msra.mxu0 0.0
    %327 = vmatprep.subr.mxu0 0.0
    %328 = vmatpush1.msra.mxu0 0.0
    %329 = vmatprep.subr.mxu0 0.0
    %330 = vmatpush1.msra.mxu0 0.0
    %331 = vmatprep.subr.mxu0 0.0
    %332 = vmatpush1.msra.mxu0 0.0
    %333 = vmatprep.subr.mxu0 0.0
    %334 = vmatpush1.msra.mxu0 0.0
    %335 = vmatprep.subr.mxu0 0.0
    %336 = vmatpush1.msra.mxu0 0.0
    %337 = vmatprep.subr.mxu0 0.0
    %338 = vmatpush1.msra.mxu0 0.0
    %339 = vmatprep.subr.mxu0 0.0
    %340 = vmatpush1.msra.mxu0 0.0
    %341 = vmatprep.subr.mxu0 0.0
    %342 = vmatpush1.msra.mxu0 0.0
    %343 = vmatprep.subr.mxu0 0.0
    %344 = vmatpush1.msra.mxu0 0.0
    %345 = vmatprep.subr.mxu0 0.0
    %346 = vmatpush1.msra.mxu0 0.0
    %347 = vmatprep.subr.mxu0 0.0
    %348 = vmatpush1.msra.mxu0 0.0
    %349 = vmatprep.mubr.f32.mxu0 0.0
    %350 = vmatmul.mubr.f32.gmra.mrb[0].mxu0 %v283
    %v351 = vpop.f32.mrb[0].mxu0
    %v352 = vadd.f32 0.0, %v351
    %v353 = vpop.f32.mrb[0].mxu0
    %354 = vdwg.mxu0
    %vm355 = vcmask 130048
    %v357 = vsel %vm355, %v352, 0
    %359 = vmatprep.subr.mxu0 0.0
    %360 = vmatpush1.msra.mxu0 %v75
    %361 = vmatprep.subr.mxu0 0.0
    %362 = vmatpush1.msra.mxu0 %v76
    %363 = vmatprep.subr.mxu0 0.0
    %364 = vmatpush1.msra.mxu0 0.0
    %365 = vmatprep.subr.mxu0 0.0
    %366 = vmatpush1.msra.mxu0 0.0
    %367 = vmatprep.subr.mxu0 0.0
    %368 = vmatpush1.msra.mxu0 0.0
    %369 = vmatprep.subr.mxu0 0.0
    %370 = vmatpush1.msra.mxu0 0.0
    %371 = vmatprep.subr.mxu0 0.0
    %372 = vmatpush1.msra.mxu0 0.0
    %373 = vmatprep.subr.mxu0 0.0
    %374 = vmatpush1.msra.mxu0 0.0
    %375 = vmatprep.subr.mxu0 0.0
    %376 = vmatpush1.msra.mxu0 0.0
    %377 = vmatprep.subr.mxu0 0.0
    %378 = vmatpush1.msra.mxu0 0.0
    %379 = vmatprep.subr.mxu0 0.0
    %380 = vmatpush1.msra.mxu0 0.0
    %381 = vmatprep.subr.mxu0 0.0
    %382 = vmatpush1.msra.mxu0 0.0
    %383 = vmatprep.subr.mxu0 0.0
    %384 = vmatpush1.msra.mxu0 0.0
    %385 = vmatprep.subr.mxu0 0.0
    %386 = vmatpush1.msra.mxu0 0.0
    %387 = vmatprep.subr.mxu0 0.0
    %388 = vmatpush1.msra.mxu0 0.0
    %389 = vmatprep.subr.mxu0 0.0
    %390 = vmatpush1.msra.mxu0 0.0
    %391 = vmatprep.subr.mxu0 0.0
    %392 = vmatpush1.msra.mxu0 0.0
    %393 = vmatprep.subr.mxu0 0.0
    %394 = vmatpush1.msra.mxu0 0.0
    %395 = vmatprep.subr.mxu0 0.0
    %396 = vmatpush1.msra.mxu0 0.0
    %397 = vmatprep.subr.mxu0 0.0
    %398 = vmatpush1.msra.mxu0 0.0
    %399 = vmatprep.subr.mxu0 0.0
    %400 = vmatpush1.msra.mxu0 0.0
    %401 = vmatprep.subr.mxu0 0.0
    %402 = vmatpush1.msra.mxu0 0.0
    %403 = vmatprep.subr.mxu0 0.0
    %404 = vmatpush1.msra.mxu0 0.0
    %405 = vmatprep.subr.mxu0 0.0
    %406 = vmatpush1.msra.mxu0 0.0
    %407 = vmatprep.subr.mxu0 0.0
    %408 = vmatpush1.msra.mxu0 0.0
    %409 = vmatprep.subr.mxu0 0.0
    %410 = vmatpush1.msra.mxu0 0.0
    %411 = vmatprep.subr.mxu0 0.0
    %412 = vmatpush1.msra.mxu0 0.0
    %413 = vmatprep.subr.mxu0 0.0
    %414 = vmatpush1.msra.mxu0 0.0
    %415 = vmatprep.subr.mxu0 0.0
    %416 = vmatpush1.msra.mxu0 0.0
    %417 = vmatprep.subr.mxu0 0.0
    %418 = vmatpush1.msra.mxu0 0.0
    %419 = vmatprep.subr.mxu0 0.0
    %420 = vmatpush1.msra.mxu0 0.0
    %421 = vmatprep.subr.mxu0 0.0
    %422 = vmatpush1.msra.mxu0 0.0
    %423 = vmatprep.mubr.f32.mxu0 0.0
    %424 = vmatmul.mubr.f32.gmra.mrb[0].mxu0 %v357
    %v425 = vpop.f32.mrb[0].mxu0
    %v426 = vadd.f32 0.0, %v425
    %v427 = vpop.f32.mrb[0].mxu0
    %428 = vdwg.mxu0
    %v430 = vsel %vm355, %v213, 0
    %432 = vmatprep.subr.mxu0 0.0
    %433 = vmatpush1.msra.mxu0 %v73
    %434 = vmatprep.subr.mxu0 0.0
    %435 = vmatpush1.msra.mxu0 %v74
    %436 = vmatprep.subr.mxu0 0.0
    %437 = vmatpush1.msra.mxu0 0.0
    %438 = vmatprep.subr.mxu0 0.0
    %439 = vmatpush1.msra.mxu0 0.0
    %440 = vmatprep.subr.mxu0 0.0
    %441 = vmatpush1.msra.mxu0 0.0
    %442 = vmatprep.subr.mxu0 0.0
    %443 = vmatpush1.msra.mxu0 0.0
    %444 = vmatprep.subr.mxu0 0.0
    %445 = vmatpush1.msra.mxu0 0.0
    %446 = vmatprep.subr.mxu0 0.0
    %447 = vmatpush1.msra.mxu0 0.0
    %448 = vmatprep.subr.mxu0 0.0
    %449 = vmatpush1.msra.mxu0 0.0
    %450 = vmatprep.subr.mxu0 0.0
    %451 = vmatpush1.msra.mxu0 0.0
    %452 = vmatprep.subr.mxu0 0.0
    %453 = vmatpush1.msra.mxu0 0.0
    %454 = vmatprep.subr.mxu0 0.0
    %455 = vmatpush1.msra.mxu0 0.0
    %456 = vmatprep.subr.mxu0 0.0
    %457 = vmatpush1.msra.mxu0 0.0
    %458 = vmatprep.subr.mxu0 0.0
    %459 = vmatpush1.msra.mxu0 0.0
    %460 = vmatprep.subr.mxu0 0.0
    %461 = vmatpush1.msra.mxu0 0.0
    %462 = vmatprep.subr.mxu0 0.0
    %463 = vmatpush1.msra.mxu0 0.0
    %464 = vmatprep.subr.mxu0 0.0
    %465 = vmatpush1.msra.mxu0 0.0
    %466 = vmatprep.subr.mxu0 0.0
    %467 = vmatpush1.msra.mxu0 0.0
    %468 = vmatprep.subr.mxu0 0.0
    %469 = vmatpush1.msra.mxu0 0.0
    %470 = vmatprep.subr.mxu0 0.0
    %471 = vmatpush1.msra.mxu0 0.0
    %472 = vmatprep.subr.mxu0 0.0
    %473 = vmatpush1.msra.mxu0 0.0
    %474 = vmatprep.subr.mxu0 0.0
    %475 = vmatpush1.msra.mxu0 0.0
    %476 = vmatprep.subr.mxu0 0.0
    %477 = vmatpush1.msra.mxu0 0.0
    %478 = vmatprep.subr.mxu0 0.0
    %479 = vmatpush1.msra.mxu0 0.0
    %480 = vmatprep.subr.mxu0 0.0
    %481 = vmatpush1.msra.mxu0 0.0
    %482 = vmatprep.subr.mxu0 0.0
    %483 = vmatpush1.msra.mxu0 0.0
    %484 = vmatprep.subr.mxu0 0.0
    %485 = vmatpush1.msra.mxu0 0.0
    %486 = vmatprep.subr.mxu0 0.0
    %487 = vmatpush1.msra.mxu0 0.0
    %488 = vmatprep.subr.mxu0 0.0
    %489 = vmatpush1.msra.mxu0 0.0
    %490 = vmatprep.subr.mxu0 0.0
    %491 = vmatpush1.msra.mxu0 0.0
    %492 = vmatprep.subr.mxu0 0.0
    %493 = vmatpush1.msra.mxu0 0.0
    %494 = vmatprep.subr.mxu0 0.0
    %495 = vmatpush1.msra.mxu0 0.0
    %496 = vmatprep.mubr.f32.mxu0 0.0
    %497 = vmatmul.mubr.f32.gmra.mrb[0].mxu0 %v430
    %v498 = vpop.f32.mrb[0].mxu0
    %v499 = vadd.f32 %v426, %v498
    %v500 = vpop.f32.mrb[0].mxu0
    %501 = vdwg.mxu0
    %v502 = vld [vmem:[%s4] sm:$0x1]
    %v504 = vlaneseq
    %v505 = vshrl.u32 %v504, 7
    %v506 = vsub.s32 0, %v505
    %v507 = vrot.slane %v502, %v506
    %v509 = vadd.f32 %v499, %v507
    %v510 = vmax.f32 %v509, 0.0
    %v511 = vld [vmem:[%s5] sm:$0xff]
    %v512 = vld [vmem:[%s5 + $0x8] sm:$0xff]
    %v513 = vld [vmem:[%s5 + $0x10] sm:$0xff]
    %v514 = vld [vmem:[%s5 + $0x18] sm:$0xff]
    %v515 = vld [vmem:[%s5 + $0x20] sm:$0xff]
    %v516 = vld [vmem:[%s5 + $0x28] sm:$0xff]
    %v517 = vld [vmem:[%s5 + $0x30] sm:$0xff]
    %v518 = vld [vmem:[%s5 + $0x38] sm:$0xff]
    %v519 = vld [vmem:[%s5 + $0x40] sm:$0xff]
    %v520 = vld [vmem:[%s5 + $0x48] sm:$0xff]
    %v521 = vld [vmem:[%s5 + $0x50] sm:$0xff]
    %v522 = vld [vmem:[%s5 + $0x58] sm:$0xff]
    %v523 = vld [vmem:[%s5 + $0x60] sm:$0xff]
    %v524 = vld [vmem:[%s5 + $0x68] sm:$0xff]
    %v525 = vld [vmem:[%s5 + $0x70] sm:$0xff]
    %v526 = vld [vmem:[%s5 + $0x78] sm:$0xff]
    %v527 = vld [vmem:[%s6] sm:$0x1]
    %v529 = vlaneseq
    %v530 = vshrl.u32 %v529, 7
    %v531 = vsub.s32 0, %v530
    %v532 = vrot.slane %v527, %v531
    %534 = vmatprep.subr.mxu0 0.0
    %535 = vmatpush1.msra.mxu0 %v511
    %536 = vmatprep.subr.mxu0 0.0
    %537 = vmatpush1.msra.mxu0 %v512
    %538 = vmatprep.subr.mxu0 0.0
    %539 = vmatpush1.msra.mxu0 %v513
    %540 = vmatprep.subr.mxu0 0.0
    %541 = vmatpush1.msra.mxu0 %v514
    %542 = vmatprep.subr.mxu0 0.0
    %543 = vmatpush1.msra.mxu0 %v515
    %544 = vmatprep.subr.mxu0 0.0
    %545 = vmatpush1.msra.mxu0 %v516
    %546 = vmatprep.subr.mxu0 0.0
    %547 = vmatpush1.msra.mxu0 %v517
    %548 = vmatprep.subr.mxu0 0.0
    %549 = vmatpush1.msra.mxu0 %v518
    %550 = vmatprep.subr.mxu0 0.0
    %551 = vmatpush1.msra.mxu0 %v519
    %552 = vmatprep.subr.mxu0 0.0
    %553 = vmatpush1.msra.mxu0 %v520
    %554 = vmatprep.subr.mxu0 0.0
    %555 = vmatpush1.msra.mxu0 %v521
    %556 = vmatprep.subr.mxu0 0.0
    %557 = vmatpush1.msra.mxu0 %v522
    %558 = vmatprep.subr.mxu0 0.0
    %559 = vmatpush1.msra.mxu0 %v523
    %560 = vmatprep.subr.mxu0 0.0
    %561 = vmatpush1.msra.mxu0 %v524
    %562 = vmatprep.subr.mxu0 0.0
    %563 = vmatpush1.msra.mxu0 %v525
    %564 = vmatprep.subr.mxu0 0.0
    %565 = vmatpush1.msra.mxu0 %v526
    %566 = vmatprep.subr.mxu0 0.0
    %567 = vmatpush1.msra.mxu0 0.0
    %568 = vmatprep.subr.mxu0 0.0
    %569 = vmatpush1.msra.mxu0 0.0
    %570 = vmatprep.subr.mxu0 0.0
    %571 = vmatpush1.msra.mxu0 0.0
    %572 = vmatprep.subr.mxu0 0.0
    %573 = vmatpush1.msra.mxu0 0.0
    %574 = vmatprep.subr.mxu0 0.0
    %575 = vmatpush1.msra.mxu0 0.0
    %576 = vmatprep.subr.mxu0 0.0
    %577 = vmatpush1.msra.mxu0 0.0
    %578 = vmatprep.subr.mxu0 0.0
    %579 = vmatpush1.msra.mxu0 0.0
    %580 = vmatprep.subr.mxu0 0.0
    %581 = vmatpush1.msra.mxu0 0.0
    %582 = vmatprep.subr.mxu0 0.0
    %583 = vmatpush1.msra.mxu0 0.0
    %584 = vmatprep.subr.mxu0 0.0
    %585 = vmatpush1.msra.mxu0 0.0
    %586 = vmatprep.subr.mxu0 0.0
    %587 = vmatpush1.msra.mxu0 0.0
    %588 = vmatprep.subr.mxu0 0.0
    %589 = vmatpush1.msra.mxu0 0.0
    %590 = vmatprep.subr.mxu0 0.0
    %591 = vmatpush1.msra.mxu0 0.0
    %592 = vmatprep.subr.mxu0 0.0
    %593 = vmatpush1.msra.mxu0 0.0
    %594 = vmatprep.subr.mxu0 0.0
    %595 = vmatpush1.msra.mxu0 0.0
    %596 = vmatprep.subr.mxu0 0.0
    %597 = vmatpush1.msra.mxu0 0.0
    %598 = vmatprep.mubr.f32.mxu0 0.0
    %599 = vmatmul.mubr.f32.gmra.mrb[0].mxu0 %v510
    %v600 = vpop.f32.mrb[0].mxu0
    %v601 = vadd.f32 %v532, %v600
    %v602 = vpop.f32.mrb[0].mxu0
    %603 = vdwg.mxu0
    %v604 = vmax.f32 %v601, 0.0
    %v605 = vld [vmem:[#allocation7] sm:$0xff]
    %v606 = vld [vmem:[#allocation7 + $0x8] sm:$0xff]
    %v607 = vld [vmem:[#allocation7 + $0x10] sm:$0xff]
    %v608 = vld [vmem:[#allocation7 + $0x18] sm:$0xff]
    %v609 = vld [vmem:[#allocation7 + $0x20] sm:$0xff]
    %v610 = vld [vmem:[#allocation7 + $0x28] sm:$0xff]
    %v611 = vld [vmem:[#allocation7 + $0x30] sm:$0xff]
    %v612 = vld [vmem:[#allocation7 + $0x38] sm:$0xff]
    %v613 = vld [vmem:[#allocation7 + $0x40] sm:$0xff]
    %v614 = vld [vmem:[#allocation7 + $0x48] sm:$0xff]
    %v615 = vld [vmem:[#allocation7 + $0x50] sm:$0xff]
    %v616 = vld [vmem:[#allocation7 + $0x58] sm:$0xff]
    %v617 = vld [vmem:[#allocation7 + $0x60] sm:$0xff]
    %v618 = vld [vmem:[#allocation7 + $0x68] sm:$0xff]
    %v619 = vld [vmem:[#allocation7 + $0x70] sm:$0xff]
    %v620 = vld [vmem:[#allocation7 + $0x78] sm:$0xff]
    %v621 = vld [vmem:[%s8] sm:$0x1]
    %v623 = vlaneseq
    %v624 = vshrl.u32 %v623, 7
    %v625 = vsub.s32 0, %v624
    %v626 = vrot.slane %v621, %v625
    %628 = vmatprep.subr.mxu0 0.0
    %629 = vmatpush1.msra.mxu0 %v605
    %630 = vmatprep.subr.mxu0 0.0
    %631 = vmatpush1.msra.mxu0 %v606
    %632 = vmatprep.subr.mxu0 0.0
    %633 = vmatpush1.msra.mxu0 %v607
    %634 = vmatprep.subr.mxu0 0.0
    %635 = vmatpush1.msra.mxu0 %v608
    %636 = vmatprep.subr.mxu0 0.0
    %637 = vmatpush1.msra.mxu0 %v609
    %638 = vmatprep.subr.mxu0 0.0
    %639 = vmatpush1.msra.mxu0 %v610
    %640 = vmatprep.subr.mxu0 0.0
    %641 = vmatpush1.msra.mxu0 %v611
    %642 = vmatprep.subr.mxu0 0.0
    %643 = vmatpush1.msra.mxu0 %v612
    %644 = vmatprep.subr.mxu0 0.0
    %645 = vmatpush1.msra.mxu0 %v613
    %646 = vmatprep.subr.mxu0 0.0
    %647 = vmatpush1.msra.mxu0 %v614
    %648 = vmatprep.subr.mxu0 0.0
    %649 = vmatpush1.msra.mxu0 %v615
    %650 = vmatprep.subr.mxu0 0.0
    %651 = vmatpush1.msra.mxu0 %v616
    %652 = vmatprep.subr.mxu0 0.0
    %653 = vmatpush1.msra.mxu0 %v617
    %654 = vmatprep.subr.mxu0 0.0
    %655 = vmatpush1.msra.mxu0 %v618
    %656 = vmatprep.subr.mxu0 0.0
    %657 = vmatpush1.msra.mxu0 %v619
    %658 = vmatprep.subr.mxu0 0.0
    %659 = vmatpush1.msra.mxu0 %v620
    %660 = vmatprep.subr.mxu0 0.0
    %661 = vmatpush1.msra.mxu0 0.0
    %662 = vmatprep.subr.mxu0 0.0
    %663 = vmatpush1.msra.mxu0 0.0
    %664 = vmatprep.subr.mxu0 0.0
    %665 = vmatpush1.msra.mxu0 0.0
    %666 = vmatprep.subr.mxu0 0.0
    %667 = vmatpush1.msra.mxu0 0.0
    %668 = vmatprep.subr.mxu0 0.0
    %669 = vmatpush1.msra.mxu0 0.0
    %670 = vmatprep.subr.mxu0 0.0
    %671 = vmatpush1.msra.mxu0 0.0
    %672 = vmatprep.subr.mxu0 0.0
    %673 = vmatpush1.msra.mxu0 0.0
    %674 = vmatprep.subr.mxu0 0.0
    %675 = vmatpush1.msra.mxu0 0.0
    %676 = vmatprep.subr.mxu0 0.0
    %677 = vmatpush1.msra.mxu0 0.0
    %678 = vmatprep.subr.mxu0 0.0
    %679 = vmatpush1.msra.mxu0 0.0
    %680 = vmatprep.subr.mxu0 0.0
    %681 = vmatpush1.msra.mxu0 0.0
    %682 = vmatprep.subr.mxu0 0.0
    %683 = vmatpush1.msra.mxu0 0.0
    %684 = vmatprep.subr.mxu0 0.0
    %685 = vmatpush1.msra.mxu0 0.0
    %686 = vmatprep.subr.mxu0 0.0
    %687 = vmatpush1.msra.mxu0 0.0
    %688 = vmatprep.subr.mxu0 0.0
    %689 = vmatpush1.msra.mxu0 0.0
    %690 = vmatprep.subr.mxu0 0.0
    %691 = vmatpush1.msra.mxu0 0.0
    %692 = vmatprep.mubr.f32.mxu0 0.0
    %693 = vmatmul.mubr.f32.gmra.mrb[0].mxu0 %v604
    %v694 = vpop.f32.mrb[0].mxu0
    %v695 = vadd.f32 %v626, %v694
    %v696 = vpop.f32.mrb[0].mxu0
    %697 = vdwg.mxu0
    %698 = vst [vmem:[#allocation8] sm:$0xff] %v695
    // Predicated region
    $region50: #{tpu_custom_call.1} parent=1 // pred_check
      _
    $region51: #{tpu_custom_call.1} parent=1 // pred_check_branch
      %700 = sbr.rel (0) target = $region53
    $region52: #{tpu_custom_call.1} parent=1 // pred_region
      %s702 = ssub.s32 128, 128
      %703 = vsyncadd [#allocation4], %s702
      %s705 = sshll.u32 [#allocation8], 4
      %s706 = int_to_ptr.vmem [resolvable:$true] %s705
      %708 = dma.vmem_to_hbm [thread:$0]  %s706, 128, %s9, [#allocation4]
    $region53: #{tpu_custom_call.1} parent=1 // pred_fallthru
      _
    // Predicated region
    $region54: #{tpu_custom_call.1} parent=1 // pred_check
      _
    $region55: #{tpu_custom_call.1} parent=1 // pred_check_branch
      %710 = sbr.rel (0) target = $region57
    $region56: #{tpu_custom_call.1} parent=1 // pred_region
      %711 = dma.done [#allocation4], 128
    $region57: #{tpu_custom_call.1} parent=1 // pred_fallthru
      _
    %712 = vsyncpa [#allocation3], 1
    %713 = vsyncpa [#allocation6], 1
    %714 = vsyncpa [#allocation4], 1

</llo_original>
